<compile_context>
chip_gen: v7x
topology: tpu7x:2x2x1
jax: 0.10.0
libtpu: 0.0.40
codegen_flags: <defaults>
</compile_context>

<pallas_src>
import functools

import jax
import jax.numpy as jnp
from jax.experimental import pallas as pl
from jax.experimental.pallas import tpu as pltpu


def _round_up(x, m):
    return ((x + m - 1) // m) * m


# ---------------------------------------------------------------------------
# Kernel bodies.
#   x_ref : (tm, Dp)  resident features (sliced along D in-kernel)
#   w_ref : (tk, tn)  fused weight tile, already (D, N) oriented
#   b_ref : (1, tn)   f32 bias row
#   o_ref : (tm, tn)  output block (resident across the D axis)
# ---------------------------------------------------------------------------
def _heads_kernel_f32out(x_ref, w_ref, b_ref, o_ref, *, tk):
    d = pl.program_id(2)

    @pl.when(d == 0)
    def _init():
        o_ref[...] = jnp.broadcast_to(b_ref[...], o_ref.shape)

    off = pl.multiple_of(d * tk, tk)
    o_ref[...] += jnp.dot(
        x_ref[:, pl.ds(off, tk)], w_ref[...],
        preferred_element_type=jnp.float32,
    )


def _heads_kernel_acc(x_ref, w_ref, b_ref, o_ref, acc_ref, *, tk):
    d = pl.program_id(2)

    @pl.when(d == 0)
    def _init():
        acc_ref[...] = jnp.broadcast_to(b_ref[...], acc_ref.shape)

    off = pl.multiple_of(d * tk, tk)
    acc_ref[...] += jnp.dot(
        x_ref[:, pl.ds(off, tk)], w_ref[...],
        preferred_element_type=jnp.float32,
    )

    @pl.when(d == pl.num_programs(2) - 1)
    def _finalize():
        o_ref[...] = acc_ref[...].astype(o_ref.dtype)


# ---------------------------------------------------------------------------
# Tile / VMEM budgeting (generation-safe: fits v7x's 64 MiB VMEM, generous on
# v5e/v6e's 128 MiB).
# ---------------------------------------------------------------------------
_WEIGHT_TILE_BUDGET = 8 << 20    # double-buffered weight tile
_X_OUT_BUDGET = 24 << 20         # resident x + output blocks + f32 accumulator
_VMEM_LIMIT_CAP = 56 << 20       # stay below v7x's 64 MiB physical VMEM


def choose_weight_tiles(n_out, feature_dim, wbytes):
    """tn/tk and padded Np/Dp depend only on (N, D, weight dtype), so the fused
    weights can be padded once in __init__."""
    tn = min(_round_up(n_out, 128), 512)
    np_pad = _round_up(n_out, tn)
    tk = min(_round_up(feature_dim, 128), 1024)
    dp_pad = _round_up(feature_dim, tk)
    while 2 * tk * tn * wbytes > _WEIGHT_TILE_BUDGET and tk > 128:
        tk //= 2
        dp_pad = _round_up(feature_dim, tk)
    return tn, np_pad, tk, dp_pad


def multi_linear_fused(x, w_t, b_row, *, n_out, tn, tk, out_dtype=None):
    """x: (B, D).  w_t: (Dp, Np) pre-padded, pre-transposed fused weights.
    b_row: (1, Np) f32.  Returns (B, n_out) = x @ W_all.T + b_all."""
    B, D = x.shape
    Dp, Np = w_t.shape
    assert Np % tn == 0 and Dp % tk == 0 and Dp >= D and Np >= n_out
    assert b_row.shape == (1, Np)
    out_dtype = x.dtype if out_dtype is None else out_dtype

    xbytes = jnp.dtype(x.dtype).itemsize
    wbytes = jnp.dtype(w_t.dtype).itemsize
    obytes = jnp.dtype(out_dtype).itemsize

    # Batch tiling: one tile for small B, 256-row tiles otherwise (fills the
    # 256-row MXU on v6e/v7x and gives the parallel grid axes work to shard
    # across the two v7x TensorCores).
    bp16 = _round_up(max(B, 1), 16)
    tm = bp16 if bp16 <= 256 else 256
    Bp = _round_up(B, tm)

    def _xout_bytes(tm_):
        return 2 * tm_ * Dp * xbytes + 2 * tm_ * tn * obytes + tm_ * tn * 4

    while tm > 16 and _xout_bytes(tm) > _X_OUT_BUDGET:
        tm = max(16, tm // 2)
        Bp = _round_up(B, tm)

    if (Bp, Dp) != (B, D):               # skip the pad copy when already aligned
        x = jnp.pad(x, ((0, Bp - B), (0, Dp - D)))

    grid = (Bp // tm, Np // tn, Dp // tk)

    if jnp.dtype(out_dtype) == jnp.dtype(jnp.float32):
        kernel = functools.partial(_heads_kernel_f32out, tk=tk)
        scratch_shapes = []
    else:
        kernel = functools.partial(_heads_kernel_acc, tk=tk)
        scratch_shapes = [pltpu.VMEM((tm, tn), jnp.float32)]

    vmem_need = _xout_bytes(tm) + 2 * tk * tn * wbytes + 2 * tn * 4
    vmem_limit = int(min(max(vmem_need * 5 // 4 + (4 << 20), 32 << 20),
                         _VMEM_LIMIT_CAP))

    cost = pl.CostEstimate(
        flops=2 * Bp * Dp * Np,
        transcendentals=0,
        bytes_accessed=Bp * Dp * xbytes + Dp * Np * wbytes + Np * 4 + Bp * Np * obytes,
    )

    out = pl.pallas_call(
        kernel,
        out_shape=jax.ShapeDtypeStruct((Bp, Np), out_dtype),
        grid_spec=pltpu.PrefetchScalarGridSpec(
            num_scalar_prefetch=0,
            grid=grid,
            in_specs=[
                # x: resident across N and D (re-DMA'd only when the batch tile changes)
                pl.BlockSpec((tm, Dp), lambda m, n, d: (m, 0)),
                # fused weight tile, canonical (K, N) orientation for the MXU
                pl.BlockSpec((tk, tn), lambda m, n, d: (d, n)),
                # lane-dense f32 bias row
                pl.BlockSpec((1, tn), lambda m, n, d: (0, n)),
            ],
            out_specs=pl.BlockSpec((tm, tn), lambda m, n, d: (m, n)),
            scratch_shapes=scratch_shapes,
        ),
        compiler_params=pltpu.CompilerParams(
            dimension_semantics=("parallel", "parallel", "arbitrary"),
            vmem_limit_bytes=vmem_limit,
        ),
        cost_estimate=cost,
    )(x, w_t, b_row)

    return out[:B, :n_out]


class AllClassifiersPallas:
    """JAX/Pallas equivalent of AllClassifiers holding K nn.Linear(D, C) heads.

    forward(x) -> {name: x @ W_k.T + b_k}.  All heads are evaluated with a
    single fused lane-dense Pallas matmul; fused weights are stored
    pre-transposed / pre-padded / pre-cast so each forward streams them from
    HBM exactly once.
    """

    def __init__(self, names, feature_dim, num_classes, key,
                 param_dtype=jnp.float32):
        self.names = list(names)
        self.feature_dim = int(feature_dim)
        self.num_classes = int(num_classes)
        self.param_dtype = jnp.dtype(param_dtype)
        K = len(self.names)
        self.n_out = K * self.num_classes

        kw, kb = jax.random.split(key)
        # PyTorch nn.Linear default init: U(-1/sqrt(in), 1/sqrt(in)), in f32.
        bound = float(self.feature_dim) ** -0.5
        w = jax.random.uniform(kw, (K, self.num_classes, self.feature_dim),
                               jnp.float32, -bound, bound)
        b = jax.random.uniform(kb, (K, self.num_classes), jnp.float32,
                               -bound, bound)

        # One-time fused layout: (N, D) -> transpose -> pad -> cast.
        w_all = w.reshape(self.n_out, self.feature_dim)
        self.tn, self.Np, self.tk, self.Dp = choose_weight_tiles(
            self.n_out, self.feature_dim, self.param_dtype.itemsize)
        w_t = jnp.pad(w_all.T, ((0, self.Dp - self.feature_dim),
                                (0, self.Np - self.n_out)))       # (Dp, Np)
        self.w_fused = w_t.astype(self.param_dtype)
        self.b_fused = jnp.pad(b.reshape(-1), (0, self.Np - self.n_out)
                               ).astype(jnp.float32).reshape(1, self.Np)

    def __len__(self):
        return len(self.names)

    def forward(self, inputs):
        x = inputs
        if x.dtype != self.param_dtype:
            x = x.astype(self.param_dtype)   # match MXU operand dtype of weights
        out = multi_linear_fused(
            x, self.w_fused, self.b_fused,
            n_out=self.n_out, tn=self.tn, tk=self.tk, out_dtype=inputs.dtype,
        )                                     # (B, K*C)
        parts = jnp.split(out, len(self.names), axis=1)
        return dict(zip(self.names, parts))


if __name__ == "__main__":
    B, D, C = 8, 32, 16
    names = ["linear_lr0.1", "linear_lr0.3", "linear_lr1.0"]

    key = jax.random.PRNGKey(0)
    k_x, k_params = jax.random.split(key)
    x = jax.random.normal(k_x, (B, D), dtype=jnp.float32)

    ok = True

    # --- f32 params, f32 input: tight check (direct-accumulate-into-output) ---
    model = AllClassifiersPallas(names, D, C, k_params)
    outputs = model.forward(x)
    jax.block_until_ready(outputs)
    for i, name in enumerate(names):
        w_slab = model.w_fused[:D, i * C:(i + 1) * C]          # (D, C) f32
        b_i = model.b_fused[0, i * C:(i + 1) * C]
        ref = x @ w_slab + b_i
        got = outputs[name]
        ok &= got.shape == (B, C) and got.dtype == x.dtype
        ok &= bool(jnp.allclose(got, ref, atol=1e-5, rtol=1e-5))

    # --- bf16 params (pre-cast once in __init__), f32 input/output ---
    model16 = AllClassifiersPallas(names, D, C, k_params, param_dtype=jnp.bfloat16)
    outputs16 = model16.forward(x)
    jax.block_until_ready(outputs16)
    x_b = x.astype(jnp.bfloat16).astype(jnp.float32)
    for i, name in enumerate(names):
        w_slab = model16.w_fused[:D, i * C:(i + 1) * C].astype(jnp.float32)
        b_i = model16.b_fused[0, i * C:(i + 1) * C]
        ref = x_b @ w_slab + b_i
        got = outputs16[name]
        ok &= got.shape == (B, C) and got.dtype == x.dtype
        ok &= bool(jnp.allclose(got, ref, atol=2e-2, rtol=2e-2))

    # --- bf16 input/output (exercises the f32 VMEM accumulator path) ---
    x16 = x.astype(jnp.bfloat16)
    outputs_b = model16.forward(x16)
    jax.block_until_ready(outputs_b)
    for i, name in enumerate(names):
        w_slab = model16.w_fused[:D, i * C:(i + 1) * C].astype(jnp.float32)
        b_i = model16.b_fused[0, i * C:(i + 1) * C]
        ref = x16.astype(jnp.float32) @ w_slab + b_i
        got = outputs_b[name]
        ok &= got.shape == (B, C) and got.dtype == jnp.bfloat16
        ok &= bool(jnp.allclose(got.astype(jnp.float32), ref, atol=4e-2, rtol=4e-2))

    print("KERNEL_OK" if ok else "KERNEL_MISMATCH")
</pallas_src>

<mosaic_0001>
module attributes {stable_mosaic.version = 11 : i64} {
  func.func @_heads_kernel_f32out(%arg0: i32, %arg1: i32, %arg2: i32, %arg3: memref<16x128xf32, #tpu.memory_space<vmem>>, %arg4: memref<128x128xf32, #tpu.memory_space<vmem>>, %arg5: memref<1x128xf32, #tpu.memory_space<vmem>>, %arg6: memref<16x128xf32, #tpu.memory_space<vmem>>) attributes {dimension_semantics = [#tpu.dimension_semantics<parallel>, #tpu.dimension_semantics<parallel>, #tpu.dimension_semantics<arbitrary>], iteration_bounds = array<i64: 1, 1, 1>, scalar_prefetch = 0 : i64, scratch_operands = 0 : i64, tpu.core_type = #tpu.core_type<tc>, window_params = [{transform_indices = @transform_0, window_bounds = array<i64: 16, 128>}, {transform_indices = @transform_1, window_bounds = array<i64: 128, 128>}, {transform_indices = @transform_2, window_bounds = array<i64: 1, 128>}, {transform_indices = @transform_3, window_bounds = array<i64: 16, 128>}]} {
    %c0_i32 = arith.constant 0 : i32
    %0 = arith.cmpi eq, %arg2, %c0_i32 : i32
    %1 = arith.extui %0 : i1 to i32
    %c0_i32_0 = arith.constant 0 : i32
    %2 = arith.cmpi ne, %1, %c0_i32_0 : i32
    scf.if %2 {
      %c0_7 = arith.constant 0 : index
      %c0_8 = arith.constant 0 : index
      %12 = vector.load %arg5[%c0_7, %c0_8] : memref<1x128xf32, #tpu.memory_space<vmem>>, vector<1x128xf32>
      %13 = vector.shape_cast %12 : vector<1x128xf32> to vector<1x128xf32>
      %14 = vector.broadcast %13 : vector<1x128xf32> to vector<16x128xf32>
      %c0_9 = arith.constant 0 : index
      %c0_10 = arith.constant 0 : index
      %15 = vector.load %arg6[%c0_9, %c0_10] : memref<16x128xf32, #tpu.memory_space<vmem>>, vector<16x128xf32>
      tpu.vector_store %arg6[%c0_9, %c0_10], %14 {strides = array<i32>} : memref<16x128xf32, #tpu.memory_space<vmem>>, vector<16x128xf32>,
    } else {
    }
    %c128_i32 = arith.constant 128 : i32
    %3 = arith.muli %arg2, %c128_i32 : i32
    %4 = tpu.assume_multiple %3, 128 : i32
    %c0 = arith.constant 0 : index
    %c0_1 = arith.constant 0 : index
    %5 = vector.load %arg6[%c0, %c0_1] : memref<16x128xf32, #tpu.memory_space<vmem>>, vector<16x128xf32>
    %c0_2 = arith.constant 0 : index
    %6 = arith.index_cast %4 : i32 to index
    %7 = vector.load %arg3[%c0_2, %6] : memref<16x128xf32, #tpu.memory_space<vmem>>, vector<16x128xf32>
    %c0_3 = arith.constant 0 : index
    %c0_4 = arith.constant 0 : index
    %8 = vector.load %arg4[%c0_3, %c0_4] : memref<128x128xf32, #tpu.memory_space<vmem>>, vector<128x128xf32>
    %cst = arith.constant dense<0.000000e+00> : vector<16x128xf32>
    %9 = tpu.matmul %7, %8, %cst {dimension_numbers = #tpu.dot_dimension_numbers<[1], [0], [0], [1], [0, 0, 1, 1], [], []>} : vector<16x128xf32>, vector<128x128xf32>, vector<16x128xf32> -> vector<16x128xf32>
    %10 = arith.addf %5, %9 : vector<16x128xf32>
    %c0_5 = arith.constant 0 : index
    %c0_6 = arith.constant 0 : index
    %11 = vector.load %arg6[%c0_5, %c0_6] : memref<16x128xf32, #tpu.memory_space<vmem>>, vector<16x128xf32>
    tpu.vector_store %arg6[%c0_5, %c0_6], %10 {strides = array<i32>} : memref<16x128xf32, #tpu.memory_space<vmem>>, vector<16x128xf32>,
    return
  }
  func.func @transform_0(%arg0: i32, %arg1: i32, %arg2: i32) -> (i32, i32) {
    %c0_i32 = arith.constant 0 : i32
    %c0_i32_0 = arith.constant 0 : i32
    return %arg0, %c0_i32 : i32, i32
  }
  func.func @transform_1(%arg0: i32, %arg1: i32, %arg2: i32) -> (i32, i32) {
    %c0_i32 = arith.constant 0 : i32
    return %arg2, %arg1 : i32, i32
  }
  func.func @transform_2(%arg0: i32, %arg1: i32, %arg2: i32) -> (i32, i32) {
    %c0_i32 = arith.constant 0 : i32
    %c0_i32_0 = arith.constant 0 : i32
    return %c0_i32, %arg1 : i32, i32
  }
  func.func @transform_3(%arg0: i32, %arg1: i32, %arg2: i32) -> (i32, i32) {
    %c0_i32 = arith.constant 0 : i32
    return %arg0, %arg1 : i32, i32
  }
}

</mosaic_0001>

<llo_original>
// kernel: tpu_custom_call.1
$region0: #{tpu_custom_call.1}
  #allocation0 [shape = 'u32[]', space=smem, size = 0x4, offset = 0x4, fixed_abs, tag = 'smem constant byte address 0x4 - core index']
  #allocation1 [shape = 'u32[144,128]{1,0:T(1,128)}', space=vmem, size = 0x12000, scoped, tag = 'internal scratch']
  %s0 = inlined_call_operand.hbm [shape: f32[16,128], index: 0, kind: input, shape index: {}]
  %s1 = inlined_call_operand.hbm [shape: f32[128,128], index: 1, kind: input, shape index: {}]
  %s2 = inlined_call_operand.vmem [shape: f32[1,128], index: 2, kind: input, shape index: {}]
  %s3 = inlined_call_operand.hbm [shape: f32[16,128], index: 3, kind: output, shape index: {}]
  %s4 = sld [smem:[#allocation0]]
  $region34: #{tpu_custom_call.1} parent=0
    _
  %s6 = ssub.s32 1, %s4
  %s7 = scalar_select 0, %s6, %s4
  $region1: #{tpu_custom_call.1} parent=0
    #allocation2 [shape = 'u8[8192]{0}', space=vmem, size = 0x2000, scoped, tag = 'input window, operand 0, single buffered']
    #allocation3 [shape = 's32[1]{0}', space=sflag, size = 0x4, scoped, tag = 'scoped memory for tpu_custom_call.1']
    #allocation4 [shape = 's32[1]{0}', space=sflag, size = 0x4, scoped, tag = 'scoped memory for tpu_custom_call.1']
    #allocation5 [shape = 'u8[65536]{0}', space=vmem, size = 0x10000, scoped, tag = 'input window, operand 1, single buffered']
    #allocation6 [shape = 's32[1]{0}', space=sflag, size = 0x4, scoped, tag = 'scoped memory for tpu_custom_call.1']
    #allocation7 [shape = 'u8[8192]{0}', space=vmem, size = 0x2000, scoped, tag = 'output window, operand 0, single buffered']
    %8 = vsyncpa [#allocation3], 0
    %9 = vsyncpa [#allocation6], 0
    %10 = vsyncpa [#allocation4], 0
    // Predicated region
    $region2: #{tpu_custom_call.1} parent=1 // pred_check
      _
    $region3: #{tpu_custom_call.1} parent=1 // pred_check_branch
      %12 = sbr.rel (0) target = $region5
    $region4: #{tpu_custom_call.1} parent=1 // pred_region
      %s14 = ssub.s32 256, 256
      %15 = vsyncadd [#allocation3], %s14
      %s16 = sshll.u32 [#allocation2], 4
      %s17 = int_to_ptr.vmem [resolvable:$true] %s16
      %22 = dma.hbm_to_vmem [thread:$0]  %s0, 256, %s17, [#allocation3], 128, 128, 8
    $region5: #{tpu_custom_call.1} parent=1 // pred_fallthru
      _
    // Predicated region
    $region6: #{tpu_custom_call.1} parent=1 // pred_check
      _
    $region7: #{tpu_custom_call.1} parent=1 // pred_check_branch
      %24 = sbr.rel (0) target = $region9
    $region8: #{tpu_custom_call.1} parent=1 // pred_region
      %s26 = ssub.s32 2048, 2048
      %27 = vsyncadd [#allocation6], %s26
      %s28 = sshll.u32 [#allocation5], 4
      %s29 = int_to_ptr.vmem [resolvable:$true] %s28
      %34 = dma.hbm_to_vmem [thread:$0]  %s1, 2048, %s29, [#allocation6], 128, 128, 8
    $region9: #{tpu_custom_call.1} parent=1 // pred_fallthru
      _
    // Predicated region
    $region10: #{tpu_custom_call.1} parent=1 // pred_check
      _
    $region11: #{tpu_custom_call.1} parent=1 // pred_check_branch
      %36 = sbr.rel (0) target = $region13
    $region12: #{tpu_custom_call.1} parent=1 // pred_region
      _
    $region13: #{tpu_custom_call.1} parent=1 // pred_fallthru
      _
    // Predicated region
    $region14: #{tpu_custom_call.1} parent=1 // pred_check
      _
    $region15: #{tpu_custom_call.1} parent=1 // pred_check_branch
      %38 = sbr.rel (0) target = $region17
    $region16: #{tpu_custom_call.1} parent=1 // pred_region
      %39 = dma.done [#allocation3], 256
    $region17: #{tpu_custom_call.1} parent=1 // pred_fallthru
      _
    // Predicated region
    $region18: #{tpu_custom_call.1} parent=1 // pred_check
      _
    $region19: #{tpu_custom_call.1} parent=1 // pred_check_branch
      %41 = sbr.rel (0) target = $region21
    $region20: #{tpu_custom_call.1} parent=1 // pred_region
      %42 = dma.done [#allocation6], 2048
    $region21: #{tpu_custom_call.1} parent=1 // pred_fallthru
      _
    %p43 = scmp.eq.s32.totalorder 0, 0
    // Predicated region
    $region22: #{tpu_custom_call.1} parent=1 // pred_check
      %p44 = pneg %p43
    $region23: #{tpu_custom_call.1} parent=1 // pred_check_branch
      %46 = sbr.rel (%p44) target = $region25
    $region24: #{tpu_custom_call.1} parent=1 // pred_region
      %v47 = vld [vmem:[%s2] sm:$0x1]
      %v49 = vlaneseq
      %v50 = vshrl.u32 %v49, 7
      %v51 = vsub.s32 0, %v50
      %v52 = vrot.slane %v47, %v51
      %54 = vst [vmem:[#allocation7] sm:$0xff] %v52
      %55 = vst [vmem:[#allocation7 + $0x8] sm:$0xff] %v52
    $region25: #{tpu_custom_call.1} parent=1 // pred_fallthru
      _
    %s56 = smul.u32 0, 128
    %v57 = vld [vmem:[#allocation7] sm:$0xff]
    %v58 = vld [vmem:[#allocation7 + $0x8] sm:$0xff]
    %s59 = sshra.s32 %s56, 7
    %s60 = sand.u32 %s56, 127
    %s61 = scalar_lea.vmem [#allocation2], %s59
    %v62 = vld [vmem:[%s61] sm:$0xff]
    %v63 = vld [vmem:[%s61 + $0x8] sm:$0xff]
    %v64 = vld [vmem:[#allocation5] sm:$0xff]
    %v65 = vld [vmem:[#allocation5 + $0x8] sm:$0xff]
    %v66 = vld [vmem:[#allocation5 + $0x10] sm:$0xff]
    %v67 = vld [vmem:[#allocation5 + $0x18] sm:$0xff]
    %v68 = vld [vmem:[#allocation5 + $0x20] sm:$0xff]
    %v69 = vld [vmem:[#allocation5 + $0x28] sm:$0xff]
    %v70 = vld [vmem:[#allocation5 + $0x30] sm:$0xff]
    %v71 = vld [vmem:[#allocation5 + $0x38] sm:$0xff]
    %v72 = vld [vmem:[#allocation5 + $0x40] sm:$0xff]
    %v73 = vld [vmem:[#allocation5 + $0x48] sm:$0xff]
    %v74 = vld [vmem:[#allocation5 + $0x50] sm:$0xff]
    %v75 = vld [vmem:[#allocation5 + $0x58] sm:$0xff]
    %v76 = vld [vmem:[#allocation5 + $0x60] sm:$0xff]
    %v77 = vld [vmem:[#allocation5 + $0x68] sm:$0xff]
    %v78 = vld [vmem:[#allocation5 + $0x70] sm:$0xff]
    %v79 = vld [vmem:[#allocation5 + $0x78] sm:$0xff]
    %80 = vmatprep.subr.mxu0 0.0
    %81 = vmatpush1.msra.mxu0 %v64
    %82 = vmatprep.subr.mxu0 0.0
    %83 = vmatpush1.msra.mxu0 %v65
    %84 = vmatprep.subr.mxu0 0.0
    %85 = vmatpush1.msra.mxu0 %v66
    %86 = vmatprep.subr.mxu0 0.0
    %87 = vmatpush1.msra.mxu0 %v67
    %88 = vmatprep.subr.mxu0 0.0
    %89 = vmatpush1.msra.mxu0 %v68
    %90 = vmatprep.subr.mxu0 0.0
    %91 = vmatpush1.msra.mxu0 %v69
    %92 = vmatprep.subr.mxu0 0.0
    %93 = vmatpush1.msra.mxu0 %v70
    %94 = vmatprep.subr.mxu0 0.0
    %95 = vmatpush1.msra.mxu0 %v71
    %96 = vmatprep.subr.mxu0 0.0
    %97 = vmatpush1.msra.mxu0 %v72
    %98 = vmatprep.subr.mxu0 0.0
    %99 = vmatpush1.msra.mxu0 %v73
    %100 = vmatprep.subr.mxu0 0.0
    %101 = vmatpush1.msra.mxu0 %v74
    %102 = vmatprep.subr.mxu0 0.0
    %103 = vmatpush1.msra.mxu0 %v75
    %104 = vmatprep.subr.mxu0 0.0
    %105 = vmatpush1.msra.mxu0 %v76
    %106 = vmatprep.subr.mxu0 0.0
    %107 = vmatpush1.msra.mxu0 %v77
    %108 = vmatprep.subr.mxu0 0.0
    %109 = vmatpush1.msra.mxu0 %v78
    %110 = vmatprep.subr.mxu0 0.0
    %111 = vmatpush1.msra.mxu0 %v79
    %112 = vmatprep.subr.mxu0 0.0
    %113 = vmatpush1.msra.mxu0 0.0
    %114 = vmatprep.subr.mxu0 0.0
    %115 = vmatpush1.msra.mxu0 0.0
    %116 = vmatprep.subr.mxu0 0.0
    %117 = vmatpush1.msra.mxu0 0.0
    %118 = vmatprep.subr.mxu0 0.0
    %119 = vmatpush1.msra.mxu0 0.0
    %120 = vmatprep.subr.mxu0 0.0
    %121 = vmatpush1.msra.mxu0 0.0
    %122 = vmatprep.subr.mxu0 0.0
    %123 = vmatpush1.msra.mxu0 0.0
    %124 = vmatprep.subr.mxu0 0.0
    %125 = vmatpush1.msra.mxu0 0.0
    %126 = vmatprep.subr.mxu0 0.0
    %127 = vmatpush1.msra.mxu0 0.0
    %128 = vmatprep.subr.mxu0 0.0
    %129 = vmatpush1.msra.mxu0 0.0
    %130 = vmatprep.subr.mxu0 0.0
    %131 = vmatpush1.msra.mxu0 0.0
    %132 = vmatprep.subr.mxu0 0.0
    %133 = vmatpush1.msra.mxu0 0.0
    %134 = vmatprep.subr.mxu0 0.0
    %135 = vmatpush1.msra.mxu0 0.0
    %136 = vmatprep.subr.mxu0 0.0
    %137 = vmatpush1.msra.mxu0 0.0
    %138 = vmatprep.subr.mxu0 0.0
    %139 = vmatpush1.msra.mxu0 0.0
    %140 = vmatprep.subr.mxu0 0.0
    %141 = vmatpush1.msra.mxu0 0.0
    %142 = vmatprep.subr.mxu0 0.0
    %143 = vmatpush1.msra.mxu0 0.0
    %144 = vmatprep.mubr.f32.mxu0 0.0
    %145 = vmatmul.mubr.f32.gmra.mrb[0].mxu0 %v62
    %v146 = vpop.f32.mrb[0].mxu0
    %v147 = vadd.f32 0.0, %v146
    %v148 = vpop.f32.mrb[0].mxu0
    %149 = vmatprep.mubr.f32.mxu0 0.0
    %150 = vmatmul.mubr.f32.gmra.mrb[0].mxu0 %v63
    %v151 = vpop.f32.mrb[0].mxu0
    %v152 = vadd.f32 0.0, %v151
    %v153 = vpop.f32.mrb[0].mxu0
    %154 = vdwg.mxu0
    %v155 = vadd.f32 %v57, %v147
    %v156 = vadd.f32 %v58, %v152
    %157 = vst [vmem:[#allocation7] sm:$0xff] %v155
    %158 = vst [vmem:[#allocation7 + $0x8] sm:$0xff] %v156
    // Predicated region
    $region26: #{tpu_custom_call.1} parent=1 // pred_check
      _
    $region27: #{tpu_custom_call.1} parent=1 // pred_check_branch
      %160 = sbr.rel (0) target = $region29
    $region28: #{tpu_custom_call.1} parent=1 // pred_region
      %s162 = ssub.s32 256, 256
      %163 = vsyncadd [#allocation4], %s162
      %s164 = sshll.u32 [#allocation7], 4
      %s165 = int_to_ptr.vmem [resolvable:$true] %s164
      %170 = dma.vmem_to_hbm [thread:$0]  %s165, 256, %s3, [#allocation4], 128, 128, 8
    $region29: #{tpu_custom_call.1} parent=1 // pred_fallthru
      _
    // Predicated region
    $region30: #{tpu_custom_call.1} parent=1 // pred_check
      _
    $region31: #{tpu_custom_call.1} parent=1 // pred_check_branch
      %172 = sbr.rel (0) target = $region33
    $region32: #{tpu_custom_call.1} parent=1 // pred_region
      %173 = dma.done [#allocation4], 256
    $region33: #{tpu_custom_call.1} parent=1 // pred_fallthru
      _
    %174 = vsyncpa [#allocation3], 1
    %175 = vsyncpa [#allocation6], 1
    %176 = vsyncpa [#allocation4], 1

</llo_original>
